<compile_context>
chip_gen: v7x
topology: tpu7x:2x2x1
jax: 0.10.0
libtpu: 0.0.40
codegen_flags: <defaults>
</compile_context>

<pallas_src>
import functools
import math

import jax
import jax.numpy as jnp
import numpy as np
from jax.experimental import pallas as pl
from jax.experimental.pallas import tpu as pltpu

LANE = 128      # vreg lane width  (last dim)
SUBLANE = 8     # vreg sublane width (second-to-last dim)


def _round_up(x, m):
    return ((x + m - 1) // m) * m


def _vmem_capacity_bytes():
    try:
        return int(pltpu.get_tpu_info().vmem_capacity_bytes)
    except Exception:
        return 64 << 20   # most conservative per-TC physical VMEM (v7x)


def _is_multi_tensorcore():
    """Heuristic: generations with >1 TensorCore addressable per device."""
    try:
        kind = jax.devices()[0].device_kind.lower()
    except Exception:
        return False
    return any(tag in kind for tag in ("v4", "v5p", "v7"))


def _pick_batch_tile(b, max_tile=1024):
    """Largest power-of-two batch tile (<= max_tile) with small padding waste."""
    b8 = _round_up(max(int(b), 1), SUBLANE)
    tile = int(max_tile)
    while tile > SUBLANE:
        padded = _round_up(b8, tile)
        if padded - b8 <= max(b8 // 8, 64):        # <= ~12.5% wasted rows
            return tile, padded
        tile //= 2
    return SUBLANE, b8


# ----------------------------------------------------------------------------
# Fused MLP kernel: x -> (Linear + ReLU) * (n_layers - 1) -> Linear
# refs layout: (x_ref, w0, b0, w1, b1, ..., w_{L-1}, b_{L-1}, o_ref)
# ----------------------------------------------------------------------------
def _fused_mlp_kernel(*refs, n_layers):
    x_ref = refs[0]
    o_ref = refs[1 + 2 * n_layers]
    h = x_ref[...].astype(jnp.bfloat16)            # single cast for layer 0
    for i in range(n_layers):
        w_ref = refs[1 + 2 * i]                    # (K, N_pad) bf16
        b_ref = refs[2 + 2 * i]                    # (1, N_pad) f32
        acc = jnp.dot(h, w_ref[...],
                      preferred_element_type=jnp.float32)   # MXU, f32 accum
        acc = acc + b_ref[...]
        if i < n_layers - 1:
            h = jnp.maximum(acc, 0.0).astype(jnp.bfloat16)  # ReLU (VPU)
        else:
            o_ref[...] = acc.astype(o_ref.dtype)            # bf16 store


def fused_mlp(x, packed_params, *, out_dtype=jnp.bfloat16,
              max_batch_tile=1024, small_batch_max=None):
    """Run the fused MLP.

    x: (B, K0) f32/bf16, K0 = true (unpadded) flattened state dim.
    packed_params: list of (w bf16 (K, N_pad), b f32 (1, N_pad)).
    Returns (B_pad, N_out_pad) `out_dtype` logits; caller slices valid part.
    """
    B, K0 = x.shape
    assert K0 == packed_params[0][0].shape[0], "layer-0 K must match input dim"
    n_layers = len(packed_params)
    N_out = packed_params[-1][0].shape[1]
    kernel = functools.partial(_fused_mlp_kernel, n_layers=n_layers)

    flat_params = []
    for w, b in packed_params:
        flat_params += [w, b]

    in_size = x.dtype.itemsize
    out_size = jnp.dtype(out_dtype).itemsize
    max_width = max(w.shape[1] for w, _ in packed_params)
    resident = sum(int(w.size) * w.dtype.itemsize + int(b.size) * b.dtype.itemsize
                   for w, b in packed_params)

    flops = sum(2 * B * w.shape[0] * w.shape[1] for w, _ in packed_params)
    bytes_accessed = int(x.size) * in_size + B * N_out * out_size + resident
    cost = pl.CostEstimate(flops=int(flops), transcendentals=0,
                           bytes_accessed=int(bytes_accessed))

    vmem_cap = int(0.75 * _vmem_capacity_bytes())
    if small_batch_max is None:
        # Multi-TC parts: route medium batches through the parallel grid.
        small_batch_max = 128 if _is_multi_tensorcore() else 512

    # ---------------- small batch: grid-less, fully VMEM resident -----------
    need_small = (int(x.size) * in_size + resident
                  + B * N_out * out_size + 2 * B * max_width * 4)
    if B <= small_batch_max and need_small <= vmem_cap:
        vmem_spec = pl.BlockSpec(memory_space=pltpu.MemorySpace.VMEM)
        return pl.pallas_call(
            kernel,
            out_shape=jax.ShapeDtypeStruct((B, N_out), out_dtype),
            in_specs=[vmem_spec] * (1 + 2 * n_layers),
            out_specs=vmem_spec,
            cost_estimate=cost,
            compiler_params=pltpu.CompilerParams(
                vmem_limit_bytes=int(max(min(2 * need_small, vmem_cap),
                                         need_small, 8 << 20))),
        )(x, *flat_params)

    # ----------- large batch: tiled "parallel" grid over the batch axis -----
    batch_tile, b_pad = _pick_batch_tile(B, max_batch_tile)
    if b_pad != B:
        x = jnp.pad(x, ((0, b_pad - B), (0, 0)))   # pad batch axis only
    grid = (b_pad // batch_tile,)
    out_shape = jax.ShapeDtypeStruct((b_pad, N_out), out_dtype)

    def run(single_buffer_weights):
        in_specs = [pl.BlockSpec((batch_tile, K0), lambda i: (i, 0))]
        for w, b in packed_params:
            if single_buffer_weights:
                in_specs.append(pl.BlockSpec(w.shape, lambda i: (0, 0),
                                             pipeline_mode=pl.Buffered(1)))
                in_specs.append(pl.BlockSpec(b.shape, lambda i: (0, 0),
                                             pipeline_mode=pl.Buffered(1)))
            else:
                in_specs.append(pl.BlockSpec(w.shape, lambda i: (0, 0)))
                in_specs.append(pl.BlockSpec(b.shape, lambda i: (0, 0)))
        out_spec = pl.BlockSpec((batch_tile, N_out), lambda i: (i, 0))

        w_bufs = 1 if single_buffer_weights else 2
        need = (resident * w_bufs
                + 2 * batch_tile * (K0 * in_size + N_out * out_size)  # dbl-buf I/O
                + 2 * batch_tile * max_width * 4)                     # f32 intermediates
        # Generation-aware budget; never clamp below `need`.
        vmem_limit = int(max(min(2 * need, vmem_cap), need + (2 << 20), 16 << 20))

        return pl.pallas_call(
            kernel,
            out_shape=out_shape,
            grid=grid,
            in_specs=in_specs,
            out_specs=out_spec,
            cost_estimate=cost,
            compiler_params=pltpu.CompilerParams(
                dimension_semantics=("parallel",),
                vmem_limit_bytes=vmem_limit),
        )(x, *flat_params)

    try:
        return run(True)
    except Exception:
        # Fallback if single-buffered (pl.Buffered(1)) specs are rejected.
        return run(False)


# ----------------------------------------------------------------------------
# Parameter handling (PyTorch nn.Linear-compatible init + padding/packing)
# ----------------------------------------------------------------------------
def init_actor_params(key, state_shape, layer, action_shape):
    """f32 params with nn.Linear default init; W stored as (in, out)."""
    dims = [int(np.prod(state_shape))] + list(layer) + [int(np.prod(action_shape))]
    params = []
    for i in range(len(dims) - 1):
        fan_in, fan_out = dims[i], dims[i + 1]
        key, kw, kb = jax.random.split(key, 3)
        bound = 1.0 / math.sqrt(fan_in)
        w = jax.random.uniform(kw, (fan_in, fan_out), jnp.float32, -bound, bound)
        b = jax.random.uniform(kb, (fan_out,), jnp.float32, -bound, bound)
        params.append((w, b))
    return params


def pack_params(params):
    """Pad output dims (and hidden-layer input dims) to 128 lanes.

    Layer 0 keeps its TRUE input dim (no K pad) so the raw flattened state is
    fed straight to the kernel with no wrapper pad/cast pass.  W -> bf16,
    bias -> f32 shaped (1, N_pad).  Padded columns/rows are zeros, so padded
    features stay exactly zero through every ReLU layer.
    """
    packed = []
    for idx, (w, b) in enumerate(params):
        k_in, k_out = w.shape
        k_in_p = k_in if idx == 0 else _round_up(k_in, LANE)
        k_out_p = _round_up(k_out, LANE)
        w_p = jnp.zeros((k_in_p, k_out_p), jnp.bfloat16)
        w_p = w_p.at[:k_in, :k_out].set(w.astype(jnp.bfloat16))
        b_p = jnp.zeros((1, k_out_p), jnp.float32).at[0, :k_out].set(b)
        packed.append((w_p, b_p))
    return packed


def actor_forward(packed_params, s, *, n_actions, max_batch_tile=1024,
                  small_batch_max=None, out_dtype=jnp.float32):
    """Equivalent of Actor.forward: returns (logits, None)."""
    batch = s.shape[0]
    x = s.reshape(batch, -1).astype(jnp.float32)           # s.view(batch, -1)
    out_pad = fused_mlp(x, packed_params,
                        max_batch_tile=max_batch_tile,
                        small_batch_max=small_batch_max)
    logits = out_pad[:batch, :n_actions].astype(out_dtype)
    # TODO(synk): action_scale / action_bias buffers exist in __init__ but are
    # never applied in forward(), so they are intentionally not implemented.
    return logits, None


def reference_forward(packed_params, x, n_actions):
    """Pure-JAX reference using the same packed params / bf16 matmul path."""
    h = x.astype(jnp.bfloat16)
    n_layers = len(packed_params)
    for i, (w, b) in enumerate(packed_params):
        h = jnp.dot(h, w, preferred_element_type=jnp.float32) + b
        if i < n_layers - 1:
            h = jnp.maximum(h, 0.0).astype(jnp.bfloat16)
    return h[:, :n_actions]


if __name__ == "__main__":
    # Small, forward-consistent shapes.
    state_shape = (4, 16)          # flattened -> 64 features
    layer = [32, 32, 16]           # hidden layers
    action_shape = (8,)            # 8 action dims
    n_actions = int(np.prod(action_shape))

    key = jax.random.PRNGKey(0)
    key, k_small, k_big = jax.random.split(key, 3)
    params = init_actor_params(key, state_shape, layer, action_shape)
    packed = pack_params(params)

    # ---- small batch: grid-less latency path (zero wrapper padding) --------
    batch = 2
    s_small = jax.random.normal(k_small, (batch,) + state_shape, dtype=jnp.float32)
    logits, extra = actor_forward(packed, s_small, n_actions=n_actions)
    logits = jax.block_until_ready(logits)

    ref = reference_forward(packed, s_small.reshape(batch, -1), n_actions)
    assert logits.shape == (batch, n_actions)
    assert extra is None
    assert bool(jnp.all(jnp.isfinite(logits)))
    np.testing.assert_allclose(np.asarray(logits), np.asarray(ref),
                               rtol=2e-2, atol=2e-2)

    # ---- larger batch: tiled "parallel"-grid path (batch-axis tiling) ------
    batch_big = 384
    s_big = jax.random.normal(k_big, (batch_big,) + state_shape, dtype=jnp.float32)
    logits_big, _ = actor_forward(packed, s_big, n_actions=n_actions,
                                  small_batch_max=128)     # force tiled path
    logits_big = jax.block_until_ready(logits_big)

    ref_big = reference_forward(packed, s_big.reshape(batch_big, -1), n_actions)
    assert logits_big.shape == (batch_big, n_actions)
    assert bool(jnp.all(jnp.isfinite(logits_big)))
    np.testing.assert_allclose(np.asarray(logits_big), np.asarray(ref_big),
                               rtol=2e-2, atol=2e-2)

    print("KERNEL_OK")
</pallas_src>

<mosaic_0001>
module attributes {stable_mosaic.version = 11 : i64} {
  func.func @_fused_mlp_kernel(%arg0: memref<2x64xf32, #tpu.memory_space<vmem>>, %arg1: memref<64x128xbf16, #tpu.memory_space<vmem>>, %arg2: memref<1x128xf32, #tpu.memory_space<vmem>>, %arg3: memref<128x128xbf16, #tpu.memory_space<vmem>>, %arg4: memref<1x128xf32, #tpu.memory_space<vmem>>, %arg5: memref<128x128xbf16, #tpu.memory_space<vmem>>, %arg6: memref<1x128xf32, #tpu.memory_space<vmem>>, %arg7: memref<128x128xbf16, #tpu.memory_space<vmem>>, %arg8: memref<1x128xf32, #tpu.memory_space<vmem>>, %arg9: memref<2x128xbf16, #tpu.memory_space<vmem>>) attributes {dimension_semantics = [], scalar_prefetch = 0 : i64, scratch_operands = 0 : i64, tpu.core_type = #tpu.core_type<tc>} {
    %c0 = arith.constant 0 : index
    %c0_0 = arith.constant 0 : index
    %0 = vector.load %arg0[%c0, %c0_0] : memref<2x64xf32, #tpu.memory_space<vmem>>, vector<2x64xf32>
    %1 = arith.truncf %0 : vector<2x64xf32> to vector<2x64xbf16>
    %c0_1 = arith.constant 0 : index
    %c0_2 = arith.constant 0 : index
    %2 = vector.load %arg1[%c0_1, %c0_2] : memref<64x128xbf16, #tpu.memory_space<vmem>>, vector<64x128xbf16>
    %cst = arith.constant dense<0.000000e+00> : vector<2x128xf32>
    %3 = tpu.matmul %1, %2, %cst {dimension_numbers = #tpu.dot_dimension_numbers<[1], [0], [0], [1], [0, 0, 1, 1], [], []>} : vector<2x64xbf16>, vector<64x128xbf16>, vector<2x128xf32> -> vector<2x128xf32>
    %c0_3 = arith.constant 0 : index
    %c0_4 = arith.constant 0 : index
    %4 = vector.load %arg2[%c0_3, %c0_4] : memref<1x128xf32, #tpu.memory_space<vmem>>, vector<1x128xf32>
    %5 = vector.broadcast %4 : vector<1x128xf32> to vector<2x128xf32>
    %6 = arith.addf %3, %5 : vector<2x128xf32>
    %cst_5 = arith.constant 0.000000e+00 : f32
    %7 = vector.broadcast %cst_5 : f32 to vector<2x128xf32>
    %8 = arith.maximumf %6, %7 : vector<2x128xf32>
    %9 = arith.truncf %8 : vector<2x128xf32> to vector<2x128xbf16>
    %c0_6 = arith.constant 0 : index
    %c0_7 = arith.constant 0 : index
    %10 = vector.load %arg3[%c0_6, %c0_7] : memref<128x128xbf16, #tpu.memory_space<vmem>>, vector<128x128xbf16>
    %cst_8 = arith.constant dense<0.000000e+00> : vector<2x128xf32>
    %11 = tpu.matmul %9, %10, %cst_8 {dimension_numbers = #tpu.dot_dimension_numbers<[1], [0], [0], [1], [0, 0, 1, 1], [], []>} : vector<2x128xbf16>, vector<128x128xbf16>, vector<2x128xf32> -> vector<2x128xf32>
    %c0_9 = arith.constant 0 : index
    %c0_10 = arith.constant 0 : index
    %12 = vector.load %arg4[%c0_9, %c0_10] : memref<1x128xf32, #tpu.memory_space<vmem>>, vector<1x128xf32>
    %13 = vector.broadcast %12 : vector<1x128xf32> to vector<2x128xf32>
    %14 = arith.addf %11, %13 : vector<2x128xf32>
    %cst_11 = arith.constant 0.000000e+00 : f32
    %15 = vector.broadcast %cst_11 : f32 to vector<2x128xf32>
    %16 = arith.maximumf %14, %15 : vector<2x128xf32>
    %17 = arith.truncf %16 : vector<2x128xf32> to vector<2x128xbf16>
    %c0_12 = arith.constant 0 : index
    %c0_13 = arith.constant 0 : index
    %18 = vector.load %arg5[%c0_12, %c0_13] : memref<128x128xbf16, #tpu.memory_space<vmem>>, vector<128x128xbf16>
    %cst_14 = arith.constant dense<0.000000e+00> : vector<2x128xf32>
    %19 = tpu.matmul %17, %18, %cst_14 {dimension_numbers = #tpu.dot_dimension_numbers<[1], [0], [0], [1], [0, 0, 1, 1], [], []>} : vector<2x128xbf16>, vector<128x128xbf16>, vector<2x128xf32> -> vector<2x128xf32>
    %c0_15 = arith.constant 0 : index
    %c0_16 = arith.constant 0 : index
    %20 = vector.load %arg6[%c0_15, %c0_16] : memref<1x128xf32, #tpu.memory_space<vmem>>, vector<1x128xf32>
    %21 = vector.broadcast %20 : vector<1x128xf32> to vector<2x128xf32>
    %22 = arith.addf %19, %21 : vector<2x128xf32>
    %cst_17 = arith.constant 0.000000e+00 : f32
    %23 = vector.broadcast %cst_17 : f32 to vector<2x128xf32>
    %24 = arith.maximumf %22, %23 : vector<2x128xf32>
    %25 = arith.truncf %24 : vector<2x128xf32> to vector<2x128xbf16>
    %c0_18 = arith.constant 0 : index
    %c0_19 = arith.constant 0 : index
    %26 = vector.load %arg7[%c0_18, %c0_19] : memref<128x128xbf16, #tpu.memory_space<vmem>>, vector<128x128xbf16>
    %cst_20 = arith.constant dense<0.000000e+00> : vector<2x128xf32>
    %27 = tpu.matmul %25, %26, %cst_20 {dimension_numbers = #tpu.dot_dimension_numbers<[1], [0], [0], [1], [0, 0, 1, 1], [], []>} : vector<2x128xbf16>, vector<128x128xbf16>, vector<2x128xf32> -> vector<2x128xf32>
    %c0_21 = arith.constant 0 : index
    %c0_22 = arith.constant 0 : index
    %28 = vector.load %arg8[%c0_21, %c0_22] : memref<1x128xf32, #tpu.memory_space<vmem>>, vector<1x128xf32>
    %29 = vector.broadcast %28 : vector<1x128xf32> to vector<2x128xf32>
    %30 = arith.addf %27, %29 : vector<2x128xf32>
    %31 = arith.truncf %30 : vector<2x128xf32> to vector<2x128xbf16>
    %c0_23 = arith.constant 0 : index
    %c0_24 = arith.constant 0 : index
    %32 = vector.load %arg9[%c0_23, %c0_24] : memref<2x128xbf16, #tpu.memory_space<vmem>>, vector<2x128xbf16>
    tpu.vector_store %arg9[%c0_23, %c0_24], %31 {strides = array<i32>} : memref<2x128xbf16, #tpu.memory_space<vmem>>, vector<2x128xbf16>,
    return
  }
}

</mosaic_0001>

<llo_original>
// kernel: tpu_custom_call.1
$region0: #{tpu_custom_call.1}
  #allocation0 [shape = 'u32[]', space=smem, size = 0x4, offset = 0x4, fixed_abs, tag = 'smem constant byte address 0x4 - core index']
  #allocation1 [shape = 'u32[144,128]{1,0:T(1,128)}', space=vmem, size = 0x12000, scoped, tag = 'internal scratch']
  %s0 = inlined_call_operand.hbm [shape: f32[2,64], index: 0, kind: input, shape index: {}]
  %s1 = inlined_call_operand.hbm [shape: bf16[64,128], index: 1, kind: input, shape index: {}]
  %s2 = inlined_call_operand.vmem [shape: f32[1,128], index: 2, kind: input, shape index: {}]
  %s3 = inlined_call_operand.hbm [shape: bf16[128,128], index: 3, kind: input, shape index: {}]
  %s4 = inlined_call_operand.vmem [shape: f32[1,128], index: 4, kind: input, shape index: {}]
  %s5 = inlined_call_operand.hbm [shape: bf16[128,128], index: 5, kind: input, shape index: {}]
  %s6 = inlined_call_operand.vmem [shape: f32[1,128], index: 6, kind: input, shape index: {}]
  %s7 = inlined_call_operand.hbm [shape: bf16[128,128], index: 7, kind: input, shape index: {}]
  %s8 = inlined_call_operand.vmem [shape: f32[1,128], index: 8, kind: input, shape index: {}]
  %s9 = inlined_call_operand.hbm [shape: bf16[2,128], index: 9, kind: output, shape index: {}]
  %s10 = sld [smem:[#allocation0]]
  $region66: #{tpu_custom_call.1} parent=0
    _
  %s12 = ssub.s32 1, %s10
  %s13 = scalar_select 0, %s12, %s10
  $region1: #{tpu_custom_call.1} parent=0
    #allocation2 [shape = 'u8[1024]{0}', space=vmem, size = 0x400, scoped, tag = 'input window, operand 0, single buffered']
    #allocation3 [shape = 's32[1]{0}', space=sflag, size = 0x4, scoped, tag = 'scoped memory for tpu_custom_call.1']
    #allocation4 [shape = 's32[1]{0}', space=sflag, size = 0x4, scoped, tag = 'scoped memory for tpu_custom_call.1']
    #allocation5 [shape = 'u8[16384]{0}', space=vmem, size = 0x4000, scoped, tag = 'input window, operand 1, single buffered']
    #allocation6 [shape = 's32[1]{0}', space=sflag, size = 0x4, scoped, tag = 'scoped memory for tpu_custom_call.1']
    #allocation7 [shape = 'u8[32768]{0}', space=vmem, size = 0x8000, scoped, tag = 'input window, operand 3, single buffered']
    #allocation8 [shape = 'u8[32768]{0}', space=vmem, size = 0x8000, scoped, tag = 'input window, operand 5, single buffered']
    #allocation9 [shape = 's32[1]{0}', space=sflag, size = 0x4, scoped, tag = 'scoped memory for tpu_custom_call.1']
    #allocation10 [shape = 'u8[32768]{0}', space=vmem, size = 0x8000, scoped, tag = 'input window, operand 7, single buffered']
    #allocation11 [shape = 'u8[512]{0}', space=vmem, size = 0x400, scoped, tag = 'output window, operand 0, single buffered']
    %14 = vsyncpa [#allocation3], 0
    %15 = vsyncpa [#allocation6], 0
    %16 = vsyncpa [#allocation9], 0
    %17 = vsyncpa [#allocation4], 0
    // Predicated region
    $region2: #{tpu_custom_call.1} parent=1 // pred_check
      _
    $region3: #{tpu_custom_call.1} parent=1 // pred_check_branch
      %19 = sbr.rel (0) target = $region5
    $region4: #{tpu_custom_call.1} parent=1 // pred_region
      %s21 = ssub.s32 32, 32
      %22 = vsyncadd [#allocation3], %s21
      %s24 = sshll.u32 [#allocation2], 4
      %s25 = int_to_ptr.vmem [resolvable:$true] %s24
      %27 = dma.hbm_to_vmem [thread:$0]  %s0, 32, %s25, [#allocation3]
    $region5: #{tpu_custom_call.1} parent=1 // pred_fallthru
      _
    // Predicated region
    $region6: #{tpu_custom_call.1} parent=1 // pred_check
      _
    $region7: #{tpu_custom_call.1} parent=1 // pred_check_branch
      %29 = sbr.rel (0) target = $region9
    $region8: #{tpu_custom_call.1} parent=1 // pred_region
      %s31 = ssub.s32 512, 512
      %32 = vsyncadd [#allocation6], %s31
      %s33 = sshll.u32 [#allocation5], 4
      %s34 = int_to_ptr.vmem [resolvable:$true] %s33
      %39 = dma.hbm_to_vmem [thread:$0]  %s1, 512, %s34, [#allocation6], 64, 64, 4
    $region9: #{tpu_custom_call.1} parent=1 // pred_fallthru
      _
    // Predicated region
    $region10: #{tpu_custom_call.1} parent=1 // pred_check
      _
    $region11: #{tpu_custom_call.1} parent=1 // pred_check_branch
      %41 = sbr.rel (0) target = $region13
    $region12: #{tpu_custom_call.1} parent=1 // pred_region
      _
    $region13: #{tpu_custom_call.1} parent=1 // pred_fallthru
      _
    // Predicated region
    $region14: #{tpu_custom_call.1} parent=1 // pred_check
      _
    $region15: #{tpu_custom_call.1} parent=1 // pred_check_branch
      %43 = sbr.rel (0) target = $region17
    $region16: #{tpu_custom_call.1} parent=1 // pred_region
      %s45 = ssub.s32 1024, 1024
      %46 = vsyncadd [#allocation6], %s45
      %s47 = sshll.u32 [#allocation7], 4
      %s48 = int_to_ptr.vmem [resolvable:$true] %s47
      %53 = dma.hbm_to_vmem [thread:$0]  %s3, 1024, %s48, [#allocation6], 64, 64, 4
    $region17: #{tpu_custom_call.1} parent=1 // pred_fallthru
      _
    // Predicated region
    $region18: #{tpu_custom_call.1} parent=1 // pred_check
      _
    $region19: #{tpu_custom_call.1} parent=1 // pred_check_branch
      %55 = sbr.rel (0) target = $region21
    $region20: #{tpu_custom_call.1} parent=1 // pred_region
      _
    $region21: #{tpu_custom_call.1} parent=1 // pred_fallthru
      _
    // Predicated region
    $region22: #{tpu_custom_call.1} parent=1 // pred_check
      _
    $region23: #{tpu_custom_call.1} parent=1 // pred_check_branch
      %57 = sbr.rel (0) target = $region25
    $region24: #{tpu_custom_call.1} parent=1 // pred_region
      %s59 = ssub.s32 1024, 1024
      %60 = vsyncadd [#allocation9], %s59
      %s61 = sshll.u32 [#allocation8], 4
      %s62 = int_to_ptr.vmem [resolvable:$true] %s61
      %67 = dma.hbm_to_vmem [thread:$0]  %s5, 1024, %s62, [#allocation9], 64, 64, 4
    $region25: #{tpu_custom_call.1} parent=1 // pred_fallthru
      _
    // Predicated region
    $region26: #{tpu_custom_call.1} parent=1 // pred_check
      _
    $region27: #{tpu_custom_call.1} parent=1 // pred_check_branch
      %69 = sbr.rel (0) target = $region29
    $region28: #{tpu_custom_call.1} parent=1 // pred_region
      _
    $region29: #{tpu_custom_call.1} parent=1 // pred_fallthru
      _
    // Predicated region
    $region30: #{tpu_custom_call.1} parent=1 // pred_check
      _
    $region31: #{tpu_custom_call.1} parent=1 // pred_check_branch
      %71 = sbr.rel (0) target = $region33
    $region32: #{tpu_custom_call.1} parent=1 // pred_region
      %s73 = ssub.s32 1024, 1024
      %74 = vsyncadd [#allocation9], %s73
      %s75 = sshll.u32 [#allocation10], 4
      %s76 = int_to_ptr.vmem [resolvable:$true] %s75
      %81 = dma.hbm_to_vmem [thread:$0]  %s7, 1024, %s76, [#allocation9], 64, 64, 4
    $region33: #{tpu_custom_call.1} parent=1 // pred_fallthru
      _
    // Predicated region
    $region34: #{tpu_custom_call.1} parent=1 // pred_check
      _
    $region35: #{tpu_custom_call.1} parent=1 // pred_check_branch
      %83 = sbr.rel (0) target = $region37
    $region36: #{tpu_custom_call.1} parent=1 // pred_region
      _
    $region37: #{tpu_custom_call.1} parent=1 // pred_fallthru
      _
    // Predicated region
    $region38: #{tpu_custom_call.1} parent=1 // pred_check
      _
    $region39: #{tpu_custom_call.1} parent=1 // pred_check_branch
      %85 = sbr.rel (0) target = $region41
    $region40: #{tpu_custom_call.1} parent=1 // pred_region
      %86 = dma.done [#allocation3], 32
    $region41: #{tpu_custom_call.1} parent=1 // pred_fallthru
      _
    // Predicated region
    $region42: #{tpu_custom_call.1} parent=1 // pred_check
      _
    $region43: #{tpu_custom_call.1} parent=1 // pred_check_branch
      %88 = sbr.rel (0) target = $region45
    $region44: #{tpu_custom_call.1} parent=1 // pred_region
      %89 = dma.done [#allocation6], 512
    $region45: #{tpu_custom_call.1} parent=1 // pred_fallthru
      _
    // Predicated region
    $region46: #{tpu_custom_call.1} parent=1 // pred_check
      _
    $region47: #{tpu_custom_call.1} parent=1 // pred_check_branch
      %91 = sbr.rel (0) target = $region49
    $region48: #{tpu_custom_call.1} parent=1 // pred_region
      %92 = dma.done [#allocation6], 1024
    $region49: #{tpu_custom_call.1} parent=1 // pred_fallthru
      _
    // Predicated region
    $region50: #{tpu_custom_call.1} parent=1 // pred_check
      _
    $region51: #{tpu_custom_call.1} parent=1 // pred_check_branch
      %94 = sbr.rel (0) target = $region53
    $region52: #{tpu_custom_call.1} parent=1 // pred_region
      %95 = dma.done [#allocation9], 1024
    $region53: #{tpu_custom_call.1} parent=1 // pred_fallthru
      _
    // Predicated region
    $region54: #{tpu_custom_call.1} parent=1 // pred_check
      _
    $region55: #{tpu_custom_call.1} parent=1 // pred_check_branch
      %97 = sbr.rel (0) target = $region57
    $region56: #{tpu_custom_call.1} parent=1 // pred_region
      %98 = dma.done [#allocation9], 1024
    $region57: #{tpu_custom_call.1} parent=1 // pred_fallthru
      _
    %v100 = vld [vmem:[#allocation2] sm:$0x3]
    %v101 = vpack.c.bf16 %v100, %v100
    %v102 = vld [vmem:[#allocation5] sm:$0xf]
    %v103 = vld [vmem:[#allocation5 + $0x4] sm:$0xf]
    %v104 = vld [vmem:[#allocation5 + $0x8] sm:$0xf]
    %v105 = vld [vmem:[#allocation5 + $0xc] sm:$0xf]
    %v106 = vld [vmem:[#allocation5 + $0x10] sm:$0xf]
    %v107 = vld [vmem:[#allocation5 + $0x14] sm:$0xf]
    %v108 = vld [vmem:[#allocation5 + $0x18] sm:$0xf]
    %v109 = vld [vmem:[#allocation5 + $0x1c] sm:$0xf]
    %v110 = vld [vmem:[%s2] sm:$0x1]
    %v112 = vlaneseq
    %v113 = vshrl.u32 %v112, 7
    %v114 = vsub.s32 0, %v113
    %v115 = vrot.slane %v110, %v114
    %v125 = vunpack.c.l.b16 %v102
    %v126 = vunpack.c.l.b16 %v103
    %v127 = vunpack.c.l.b16 %v104
    %v128 = vunpack.c.l.b16 %v105
    %v129 = vunpack.c.l.b16 %v106
    %v130 = vunpack.c.l.b16 %v107
    %v131 = vunpack.c.l.b16 %v108
    %v132 = vunpack.c.l.b16 %v109
    %v133 = vpack.c.b16 %v126, %v125
    %v134 = vpack.c.b16 %v128, %v127
    %v135 = vpack.c.b16 %v130, %v129
    %v136 = vpack.c.b16 %v132, %v131
    %vm141 = vcmask 523264
    %v143 = vsel %vm141, %v101, 0
    %145 = vmatprep.subr.bf16.mxu0 0
    %146 = vmatpush1.bf16.msra.mxu0 %v133
    %147 = vmatprep.subr.bf16.mxu0 0
    %148 = vmatpush1.bf16.msra.mxu0 %v134
    %149 = vmatprep.subr.bf16.mxu0 0
    %150 = vmatpush1.bf16.msra.mxu0 %v135
    %151 = vmatprep.subr.bf16.mxu0 0
    %152 = vmatpush1.bf16.msra.mxu0 %v136
    %153 = vmatprep.subr.bf16.mxu0 0
    %154 = vmatpush1.bf16.msra.mxu0 0
    %155 = vmatprep.subr.bf16.mxu0 0
    %156 = vmatpush1.bf16.msra.mxu0 0
    %157 = vmatprep.subr.bf16.mxu0 0
    %158 = vmatpush1.bf16.msra.mxu0 0
    %159 = vmatprep.subr.bf16.mxu0 0
    %160 = vmatpush1.bf16.msra.mxu0 0
    %161 = vmatprep.subr.bf16.mxu0 0
    %162 = vmatpush1.bf16.msra.mxu0 0
    %163 = vmatprep.subr.bf16.mxu0 0
    %164 = vmatpush1.bf16.msra.mxu0 0
    %165 = vmatprep.subr.bf16.mxu0 0
    %166 = vmatpush1.bf16.msra.mxu0 0
    %167 = vmatprep.subr.bf16.mxu0 0
    %168 = vmatpush1.bf16.msra.mxu0 0
    %169 = vmatprep.subr.bf16.mxu0 0
    %170 = vmatpush1.bf16.msra.mxu0 0
    %171 = vmatprep.subr.bf16.mxu0 0
    %172 = vmatpush1.bf16.msra.mxu0 0
    %173 = vmatprep.subr.bf16.mxu0 0
    %174 = vmatpush1.bf16.msra.mxu0 0
    %175 = vmatprep.subr.bf16.mxu0 0
    %176 = vmatpush1.bf16.msra.mxu0 0
    %177 = vmatprep.mubr.bf16.mxu0 0
    %178 = vmatmul.mubr.bf16.gmra.mrb[0].mxu0 %v143
    %v179 = vpop.f32.mrb[0].mxu0
    %v180 = vadd.f32 %v115, %v179
    %v181 = vpop.f32.mrb[0].mxu0
    %v182 = vpop.f32.mrb[0].mxu0
    %v183 = vpop.f32.mrb[0].mxu0
    %184 = vdwg.mxu0
    %v185 = vmax.f32 %v180, 0.0
    %v186 = vpack.c.bf16 %v185, %v185
    %v187 = vld [vmem:[#allocation7] sm:$0xf]
    %v188 = vld [vmem:[#allocation7 + $0x4] sm:$0xf]
    %v189 = vld [vmem:[#allocation7 + $0x8] sm:$0xf]
    %v190 = vld [vmem:[#allocation7 + $0xc] sm:$0xf]
    %v191 = vld [vmem:[#allocation7 + $0x10] sm:$0xf]
    %v192 = vld [vmem:[#allocation7 + $0x14] sm:$0xf]
    %v193 = vld [vmem:[#allocation7 + $0x18] sm:$0xf]
    %v194 = vld [vmem:[#allocation7 + $0x1c] sm:$0xf]
    %v195 = vld [vmem:[#allocation7 + $0x20] sm:$0xf]
    %v196 = vld [vmem:[#allocation7 + $0x24] sm:$0xf]
    %v197 = vld [vmem:[#allocation7 + $0x28] sm:$0xf]
    %v198 = vld [vmem:[#allocation7 + $0x2c] sm:$0xf]
    %v199 = vld [vmem:[#allocation7 + $0x30] sm:$0xf]
    %v200 = vld [vmem:[#allocation7 + $0x34] sm:$0xf]
    %v201 = vld [vmem:[#allocation7 + $0x38] sm:$0xf]
    %v202 = vld [vmem:[#allocation7 + $0x3c] sm:$0xf]
    %v203 = vld [vmem:[%s4] sm:$0x1]
    %v205 = vlaneseq
    %v206 = vshrl.u32 %v205, 7
    %v207 = vsub.s32 0, %v206
    %v208 = vrot.slane %v203, %v207
    %v226 = vunpack.c.l.b16 %v187
    %v227 = vunpack.c.l.b16 %v188
    %v228 = vunpack.c.l.b16 %v189
    %v229 = vunpack.c.l.b16 %v190
    %v230 = vunpack.c.l.b16 %v191
    %v231 = vunpack.c.l.b16 %v192
    %v232 = vunpack.c.l.b16 %v193
    %v233 = vunpack.c.l.b16 %v194
    %v234 = vunpack.c.l.b16 %v195
    %v235 = vunpack.c.l.b16 %v196
    %v236 = vunpack.c.l.b16 %v197
    %v237 = vunpack.c.l.b16 %v198
    %v238 = vunpack.c.l.b16 %v199
    %v239 = vunpack.c.l.b16 %v200
    %v240 = vunpack.c.l.b16 %v201
    %v241 = vunpack.c.l.b16 %v202
    %v242 = vpack.c.b16 %v227, %v226
    %v243 = vpack.c.b16 %v229, %v228
    %v244 = vpack.c.b16 %v231, %v230
    %v245 = vpack.c.b16 %v233, %v232
    %v246 = vpack.c.b16 %v235, %v234
    %v247 = vpack.c.b16 %v237, %v236
    %v248 = vpack.c.b16 %v239, %v238
    %v249 = vpack.c.b16 %v241, %v240
    %258 = vmatprep.subr.bf16.mxu0 0
    %259 = vmatpush1.bf16.msra.mxu0 %v242
    %260 = vmatprep.subr.bf16.mxu0 0
    %261 = vmatpush1.bf16.msra.mxu0 %v243
    %262 = vmatprep.subr.bf16.mxu0 0
    %263 = vmatpush1.bf16.msra.mxu0 %v244
    %264 = vmatprep.subr.bf16.mxu0 0
    %265 = vmatpush1.bf16.msra.mxu0 %v245
    %266 = vmatprep.subr.bf16.mxu0 0
    %267 = vmatpush1.bf16.msra.mxu0 %v246
    %268 = vmatprep.subr.bf16.mxu0 0
    %269 = vmatpush1.bf16.msra.mxu0 %v247
    %270 = vmatprep.subr.bf16.mxu0 0
    %271 = vmatpush1.bf16.msra.mxu0 %v248
    %272 = vmatprep.subr.bf16.mxu0 0
    %273 = vmatpush1.bf16.msra.mxu0 %v249
    %274 = vmatprep.subr.bf16.mxu0 0
    %275 = vmatpush1.bf16.msra.mxu0 0
    %276 = vmatprep.subr.bf16.mxu0 0
    %277 = vmatpush1.bf16.msra.mxu0 0
    %278 = vmatprep.subr.bf16.mxu0 0
    %279 = vmatpush1.bf16.msra.mxu0 0
    %280 = vmatprep.subr.bf16.mxu0 0
    %281 = vmatpush1.bf16.msra.mxu0 0
    %282 = vmatprep.subr.bf16.mxu0 0
    %283 = vmatpush1.bf16.msra.mxu0 0
    %284 = vmatprep.subr.bf16.mxu0 0
    %285 = vmatpush1.bf16.msra.mxu0 0
    %286 = vmatprep.subr.bf16.mxu0 0
    %287 = vmatpush1.bf16.msra.mxu0 0
    %288 = vmatprep.subr.bf16.mxu0 0
    %289 = vmatpush1.bf16.msra.mxu0 0
    %290 = vmatprep.mubr.bf16.mxu0 0
    %291 = vmatmul.mubr.bf16.gmra.mrb[0].mxu0 %v186
    %v292 = vpop.f32.mrb[0].mxu0
    %v293 = vadd.f32 %v208, %v292
    %v294 = vpop.f32.mrb[0].mxu0
    %v295 = vpop.f32.mrb[0].mxu0
    %v296 = vpop.f32.mrb[0].mxu0
    %297 = vdwg.mxu0
    %v298 = vmax.f32 %v293, 0.0
    %v299 = vpack.c.bf16 %v298, %v298
    %v300 = vld [vmem:[#allocation8] sm:$0xf]
    %v301 = vld [vmem:[#allocation8 + $0x4] sm:$0xf]
    %v302 = vld [vmem:[#allocation8 + $0x8] sm:$0xf]
    %v303 = vld [vmem:[#allocation8 + $0xc] sm:$0xf]
    %v304 = vld [vmem:[#allocation8 + $0x10] sm:$0xf]
    %v305 = vld [vmem:[#allocation8 + $0x14] sm:$0xf]
    %v306 = vld [vmem:[#allocation8 + $0x18] sm:$0xf]
    %v307 = vld [vmem:[#allocation8 + $0x1c] sm:$0xf]
    %v308 = vld [vmem:[#allocation8 + $0x20] sm:$0xf]
    %v309 = vld [vmem:[#allocation8 + $0x24] sm:$0xf]
    %v310 = vld [vmem:[#allocation8 + $0x28] sm:$0xf]
    %v311 = vld [vmem:[#allocation8 + $0x2c] sm:$0xf]
    %v312 = vld [vmem:[#allocation8 + $0x30] sm:$0xf]
    %v313 = vld [vmem:[#allocation8 + $0x34] sm:$0xf]
    %v314 = vld [vmem:[#allocation8 + $0x38] sm:$0xf]
    %v315 = vld [vmem:[#allocation8 + $0x3c] sm:$0xf]
    %v316 = vld [vmem:[%s6] sm:$0x1]
    %v318 = vlaneseq
    %v319 = vshrl.u32 %v318, 7
    %v320 = vsub.s32 0, %v319
    %v321 = vrot.slane %v316, %v320
    %v339 = vunpack.c.l.b16 %v300
    %v340 = vunpack.c.l.b16 %v301
    %v341 = vunpack.c.l.b16 %v302
    %v342 = vunpack.c.l.b16 %v303
    %v343 = vunpack.c.l.b16 %v304
    %v344 = vunpack.c.l.b16 %v305
    %v345 = vunpack.c.l.b16 %v306
    %v346 = vunpack.c.l.b16 %v307
    %v347 = vunpack.c.l.b16 %v308
    %v348 = vunpack.c.l.b16 %v309
    %v349 = vunpack.c.l.b16 %v310
    %v350 = vunpack.c.l.b16 %v311
    %v351 = vunpack.c.l.b16 %v312
    %v352 = vunpack.c.l.b16 %v313
    %v353 = vunpack.c.l.b16 %v314
    %v354 = vunpack.c.l.b16 %v315
    %v355 = vpack.c.b16 %v340, %v339
    %v356 = vpack.c.b16 %v342, %v341
    %v357 = vpack.c.b16 %v344, %v343
    %v358 = vpack.c.b16 %v346, %v345
    %v359 = vpack.c.b16 %v348, %v347
    %v360 = vpack.c.b16 %v350, %v349
    %v361 = vpack.c.b16 %v352, %v351
    %v362 = vpack.c.b16 %v354, %v353
    %371 = vmatprep.subr.bf16.mxu0 0
    %372 = vmatpush1.bf16.msra.mxu0 %v355
    %373 = vmatprep.subr.bf16.mxu0 0
    %374 = vmatpush1.bf16.msra.mxu0 %v356
    %375 = vmatprep.subr.bf16.mxu0 0
    %376 = vmatpush1.bf16.msra.mxu0 %v357
    %377 = vmatprep.subr.bf16.mxu0 0
    %378 = vmatpush1.bf16.msra.mxu0 %v358
    %379 = vmatprep.subr.bf16.mxu0 0
    %380 = vmatpush1.bf16.msra.mxu0 %v359
    %381 = vmatprep.subr.bf16.mxu0 0
    %382 = vmatpush1.bf16.msra.mxu0 %v360
    %383 = vmatprep.subr.bf16.mxu0 0
    %384 = vmatpush1.bf16.msra.mxu0 %v361
    %385 = vmatprep.subr.bf16.mxu0 0
    %386 = vmatpush1.bf16.msra.mxu0 %v362
    %387 = vmatprep.subr.bf16.mxu0 0
    %388 = vmatpush1.bf16.msra.mxu0 0
    %389 = vmatprep.subr.bf16.mxu0 0
    %390 = vmatpush1.bf16.msra.mxu0 0
    %391 = vmatprep.subr.bf16.mxu0 0
    %392 = vmatpush1.bf16.msra.mxu0 0
    %393 = vmatprep.subr.bf16.mxu0 0
    %394 = vmatpush1.bf16.msra.mxu0 0
    %395 = vmatprep.subr.bf16.mxu0 0
    %396 = vmatpush1.bf16.msra.mxu0 0
    %397 = vmatprep.subr.bf16.mxu0 0
    %398 = vmatpush1.bf16.msra.mxu0 0
    %399 = vmatprep.subr.bf16.mxu0 0
    %400 = vmatpush1.bf16.msra.mxu0 0
    %401 = vmatprep.subr.bf16.mxu0 0
    %402 = vmatpush1.bf16.msra.mxu0 0
    %403 = vmatprep.mubr.bf16.mxu0 0
    %404 = vmatmul.mubr.bf16.gmra.mrb[0].mxu0 %v299
    %v405 = vpop.f32.mrb[0].mxu0
    %v406 = vadd.f32 %v321, %v405
    %v407 = vpop.f32.mrb[0].mxu0
    %v408 = vpop.f32.mrb[0].mxu0
    %v409 = vpop.f32.mrb[0].mxu0
    %410 = vdwg.mxu0
    %v411 = vmax.f32 %v406, 0.0
    %v412 = vpack.c.bf16 %v411, %v411
    %v413 = vld [vmem:[#allocation10] sm:$0xf]
    %v414 = vld [vmem:[#allocation10 + $0x4] sm:$0xf]
    %v415 = vld [vmem:[#allocation10 + $0x8] sm:$0xf]
    %v416 = vld [vmem:[#allocation10 + $0xc] sm:$0xf]
    %v417 = vld [vmem:[#allocation10 + $0x10] sm:$0xf]
    %v418 = vld [vmem:[#allocation10 + $0x14] sm:$0xf]
    %v419 = vld [vmem:[#allocation10 + $0x18] sm:$0xf]
    %v420 = vld [vmem:[#allocation10 + $0x1c] sm:$0xf]
    %v421 = vld [vmem:[#allocation10 + $0x20] sm:$0xf]
    %v422 = vld [vmem:[#allocation10 + $0x24] sm:$0xf]
    %v423 = vld [vmem:[#allocation10 + $0x28] sm:$0xf]
    %v424 = vld [vmem:[#allocation10 + $0x2c] sm:$0xf]
    %v425 = vld [vmem:[#allocation10 + $0x30] sm:$0xf]
    %v426 = vld [vmem:[#allocation10 + $0x34] sm:$0xf]
    %v427 = vld [vmem:[#allocation10 + $0x38] sm:$0xf]
    %v428 = vld [vmem:[#allocation10 + $0x3c] sm:$0xf]
    %v429 = vld [vmem:[%s8] sm:$0x1]
    %v431 = vlaneseq
    %v432 = vshrl.u32 %v431, 7
    %v433 = vsub.s32 0, %v432
    %v434 = vrot.slane %v429, %v433
    %v452 = vunpack.c.l.b16 %v413
    %v453 = vunpack.c.l.b16 %v414
    %v454 = vunpack.c.l.b16 %v415
    %v455 = vunpack.c.l.b16 %v416
    %v456 = vunpack.c.l.b16 %v417
    %v457 = vunpack.c.l.b16 %v418
    %v458 = vunpack.c.l.b16 %v419
    %v459 = vunpack.c.l.b16 %v420
    %v460 = vunpack.c.l.b16 %v421
    %v461 = vunpack.c.l.b16 %v422
    %v462 = vunpack.c.l.b16 %v423
    %v463 = vunpack.c.l.b16 %v424
    %v464 = vunpack.c.l.b16 %v425
    %v465 = vunpack.c.l.b16 %v426
    %v466 = vunpack.c.l.b16 %v427
    %v467 = vunpack.c.l.b16 %v428
    %v468 = vpack.c.b16 %v453, %v452
    %v469 = vpack.c.b16 %v455, %v454
    %v470 = vpack.c.b16 %v457, %v456
    %v471 = vpack.c.b16 %v459, %v458
    %v472 = vpack.c.b16 %v461, %v460
    %v473 = vpack.c.b16 %v463, %v462
    %v474 = vpack.c.b16 %v465, %v464
    %v475 = vpack.c.b16 %v467, %v466
    %484 = vmatprep.subr.bf16.mxu0 0
    %485 = vmatpush1.bf16.msra.mxu0 %v468
    %486 = vmatprep.subr.bf16.mxu0 0
    %487 = vmatpush1.bf16.msra.mxu0 %v469
    %488 = vmatprep.subr.bf16.mxu0 0
    %489 = vmatpush1.bf16.msra.mxu0 %v470
    %490 = vmatprep.subr.bf16.mxu0 0
    %491 = vmatpush1.bf16.msra.mxu0 %v471
    %492 = vmatprep.subr.bf16.mxu0 0
    %493 = vmatpush1.bf16.msra.mxu0 %v472
    %494 = vmatprep.subr.bf16.mxu0 0
    %495 = vmatpush1.bf16.msra.mxu0 %v473
    %496 = vmatprep.subr.bf16.mxu0 0
    %497 = vmatpush1.bf16.msra.mxu0 %v474
    %498 = vmatprep.subr.bf16.mxu0 0
    %499 = vmatpush1.bf16.msra.mxu0 %v475
    %500 = vmatprep.subr.bf16.mxu0 0
    %501 = vmatpush1.bf16.msra.mxu0 0
    %502 = vmatprep.subr.bf16.mxu0 0
    %503 = vmatpush1.bf16.msra.mxu0 0
    %504 = vmatprep.subr.bf16.mxu0 0
    %505 = vmatpush1.bf16.msra.mxu0 0
    %506 = vmatprep.subr.bf16.mxu0 0
    %507 = vmatpush1.bf16.msra.mxu0 0
    %508 = vmatprep.subr.bf16.mxu0 0
    %509 = vmatpush1.bf16.msra.mxu0 0
    %510 = vmatprep.subr.bf16.mxu0 0
    %511 = vmatpush1.bf16.msra.mxu0 0
    %512 = vmatprep.subr.bf16.mxu0 0
    %513 = vmatpush1.bf16.msra.mxu0 0
    %514 = vmatprep.subr.bf16.mxu0 0
    %515 = vmatpush1.bf16.msra.mxu0 0
    %516 = vmatprep.mubr.bf16.mxu0 0
    %517 = vmatmul.mubr.bf16.gmra.mrb[0].mxu0 %v412
    %v518 = vpop.f32.mrb[0].mxu0
    %v519 = vadd.f32 %v434, %v518
    %v520 = vpop.f32.mrb[0].mxu0
    %v521 = vpop.f32.mrb[0].mxu0
    %v522 = vpop.f32.mrb[0].mxu0
    %523 = vdwg.mxu0
    %v524 = vpack.c.bf16 %v519, %v519
    %525 = vst [vmem:[#allocation11] sm:$0x1] %v524
    // Predicated region
    $region58: #{tpu_custom_call.1} parent=1 // pred_check
      _
    $region59: #{tpu_custom_call.1} parent=1 // pred_check_branch
      %527 = sbr.rel (0) target = $region61
    $region60: #{tpu_custom_call.1} parent=1 // pred_region
      %s529 = ssub.s32 16, 16
      %530 = vsyncadd [#allocation4], %s529
      %s532 = sshll.u32 [#allocation11], 4
      %s533 = int_to_ptr.vmem [resolvable:$true] %s532
      %535 = dma.vmem_to_hbm [thread:$0]  %s533, 16, %s9, [#allocation4]
    $region61: #{tpu_custom_call.1} parent=1 // pred_fallthru
      _
    // Predicated region
    $region62: #{tpu_custom_call.1} parent=1 // pred_check
      _
    $region63: #{tpu_custom_call.1} parent=1 // pred_check_branch
      %537 = sbr.rel (0) target = $region65
    $region64: #{tpu_custom_call.1} parent=1 // pred_region
      %538 = dma.done [#allocation4], 16
    $region65: #{tpu_custom_call.1} parent=1 // pred_fallthru
      _
    %539 = vsyncpa [#allocation3], 1
    %540 = vsyncpa [#allocation6], 1
    %541 = vsyncpa [#allocation9], 1
    %542 = vsyncpa [#allocation4], 1

</llo_original>
